<compile_context>
chip_gen: v7x
topology: tpu7x:2x2x1
jax: 0.10.0
libtpu: 0.0.40
codegen_flags: <defaults>
</compile_context>

<pallas_src>
import functools

import jax
import jax.numpy as jnp
from jax import lax
from jax.experimental import pallas as pl
from jax.experimental.pallas import tpu as pltpu

HIDDEN = 64
LANE = 128          # lane width: output is padded to a multiple of this
MAX_TILE_B = 2048   # largest batch tile (per-tile VMEM ~5 MiB, fits every generation)


def _round_up(x, m):
    return ((x + m - 1) // m) * m


def _cdiv(a, b):
    return -(-a // b)


def aux_w_kernel(y_ref, w1_ref, b1_ref, w2_ref, b2_ref, w3_ref, b3_ref,
                 out_ref, *, y_dim, w_dim):
    """One batch tile: L1 -> ReLU -> L2 -> ReLU -> L3 (lane-dense), exp on sigma lanes.

    For tiny y_dim (the real use case is y_dim == 1) layer 1 runs as a VPU
    broadcast multiply-add instead of a K<8 MXU matmul.
    """
    if y_dim <= 8:
        y = y_ref[...]                                    # (TILE_B, y_dim)
        h1 = y[:, 0:1] * w1_ref[0:1, :]                   # VPU broadcast mul
        for k in range(1, y_dim):                         # static, tiny unroll
            h1 = h1 + y[:, k:k + 1] * w1_ref[k:k + 1, :]
        h1 = h1 + b1_ref[...]
    else:
        h1 = jnp.dot(y_ref[...], w1_ref[...],
                     preferred_element_type=jnp.float32) + b1_ref[...]
    h1 = jnp.maximum(h1, 0.0)                             # ReLU

    h2 = jnp.dot(h1, w2_ref[...],
                 preferred_element_type=jnp.float32) + b2_ref[...]
    h2 = jnp.maximum(h2, 0.0)                             # ReLU

    # (TILE_B, OUT_PAD) lane-dense result; OUT_PAD is a multiple of 128.
    out = jnp.dot(h2, w3_ref[...],
                  preferred_element_type=jnp.float32) + b3_ref[...]

    # Single fused unmasked store; exp only on the sigma lanes (lane >= w_dim).
    # EUP slot is otherwise idle, so the exp over masked / padded lanes is free.
    lane = lax.broadcasted_iota(jnp.int32, out.shape, dimension=1)
    out_ref[...] = jnp.where(lane < w_dim, out, jnp.exp(out))


@functools.partial(jax.jit, static_argnames=("w_dim",))
def aux_w_forward(y, params, *, w_dim):
    """Returns (mu, sigma): parameters of Normal(mu, sigma) = q_delta(w|y)."""
    w1, b1, w2, b2, w3, b3 = params
    B, y_dim = y.shape
    out_dim = 2 * w_dim
    out_pad = _round_up(max(out_dim, LANE), LANE)         # lane-dense output width

    # ---- tile selection: >=2 even tiles (v7x megacore), minimal batch padding ----
    num_tiles = max(2, _cdiv(B, MAX_TILE_B))
    num_tiles += num_tiles % 2                            # even -> both TCs busy
    tile_b = _round_up(_cdiv(B, num_tiles), 8)
    num_tiles = max(2, _cdiv(B, tile_b))
    num_tiles += num_tiles % 2
    B_pad = num_tiles * tile_b

    y_p = y.astype(jnp.float32)
    if B_pad != B:
        y_p = jnp.zeros((B_pad, y_dim), jnp.float32).at[:B, :].set(y_p)

    # ---- zero-pad the last layer to the lane-dense output width ----
    w3_p = jnp.zeros((HIDDEN, out_pad), jnp.float32).at[:, :out_dim].set(
        w3.astype(jnp.float32))
    b3_p = jnp.zeros((1, out_pad), jnp.float32).at[:, :out_dim].set(
        b3.astype(jnp.float32))

    kernel = functools.partial(aux_w_kernel, y_dim=y_dim, w_dim=w_dim)

    def resident(shape):  # weights/biases: same block every grid step
        return pl.BlockSpec(shape, lambda i: (0, 0))

    cost = pl.CostEstimate(
        flops=2 * B_pad * (y_dim * HIDDEN + HIDDEN * HIDDEN + HIDDEN * out_pad),
        transcendentals=B_pad * out_pad,                  # exp over all padded lanes
        bytes_accessed=4 * (B_pad * (y_dim + out_pad)
                            + y_dim * HIDDEN + HIDDEN * HIDDEN + HIDDEN * out_pad
                            + 2 * HIDDEN + out_pad),
    )

    out = pl.pallas_call(
        kernel,
        out_shape=jax.ShapeDtypeStruct((B_pad, out_pad), jnp.float32),
        grid=(num_tiles,),
        in_specs=[
            pl.BlockSpec((tile_b, y_dim), lambda i: (i, 0)),  # y: tiled over batch
            resident((y_dim, HIDDEN)),                        # w1
            resident((1, HIDDEN)),                            # b1
            resident((HIDDEN, HIDDEN)),                       # w2
            resident((1, HIDDEN)),                            # b2
            resident((HIDDEN, out_pad)),                      # w3 (lane-padded)
            resident((1, out_pad)),                           # b3 (lane-padded)
        ],
        out_specs=pl.BlockSpec((tile_b, out_pad), lambda i: (i, 0)),
        compiler_params=pltpu.CompilerParams(
            dimension_semantics=("parallel",),                # megacore sharding
            vmem_limit_bytes=16 * 1024 * 1024,                # right-sized footprint
        ),
        cost_estimate=cost,
    )(y_p, w1.astype(jnp.float32), b1.astype(jnp.float32),
      w2.astype(jnp.float32), b2.astype(jnp.float32), w3_p, b3_p)

    mu = out[:B, :w_dim]
    sigma = out[:B, w_dim:out_dim]
    return mu, sigma


def init_params(key, y_dim, w_dim):
    """Deterministic init mimicking nn.Linear shapes (in, out) + (1, out) bias."""
    ks = jax.random.split(key, 6)

    def lin(kw, kb, fan_in, fan_out):
        bound = 1.0 / jnp.sqrt(fan_in)
        w = jax.random.uniform(kw, (fan_in, fan_out), jnp.float32, -bound, bound)
        b = jax.random.uniform(kb, (1, fan_out), jnp.float32, -bound, bound)
        return w, b

    w1, b1 = lin(ks[0], ks[1], y_dim, HIDDEN)
    w2, b2 = lin(ks[2], ks[3], HIDDEN, HIDDEN)
    w3, b3 = lin(ks[4], ks[5], HIDDEN, 2 * w_dim)
    return (w1, b1, w2, b2, w3, b3)


def reference_forward(y, params, w_dim):
    w1, b1, w2, b2, w3, b3 = params
    h = jnp.maximum(y @ w1 + b1, 0.0)
    h = jnp.maximum(h @ w2 + b2, 0.0)
    out = h @ w3 + b3
    return out[:, :w_dim], jnp.exp(out[:, w_dim:])


if __name__ == "__main__":
    key = jax.random.PRNGKey(0)
    k_param, k_y1, k_y2 = jax.random.split(key, 3)

    y_dim, w_dim = 1, 2
    params = init_params(k_param, y_dim, w_dim)

    # Small case (minimal grid: 2 tiles of 8 rows).
    y_small = jax.random.normal(k_y1, (8, y_dim), jnp.float32)
    mu, sigma = aux_w_forward(y_small, params, w_dim=w_dim)
    jax.block_until_ready((mu, sigma))
    mu_r, sigma_r = reference_forward(y_small, params, w_dim)
    assert jnp.allclose(mu, mu_r, atol=1e-5, rtol=1e-5)
    assert jnp.allclose(sigma, sigma_r, atol=1e-5, rtol=1e-5)

    # Larger case exercising tile selection + tail padding (B not a multiple of 8).
    y_big = jax.random.normal(k_y2, (600, y_dim), jnp.float32)
    mu, sigma = aux_w_forward(y_big, params, w_dim=w_dim)
    jax.block_until_ready((mu, sigma))
    mu_r, sigma_r = reference_forward(y_big, params, w_dim)
    assert jnp.allclose(mu, mu_r, atol=1e-5, rtol=1e-5)
    assert jnp.allclose(sigma, sigma_r, atol=1e-5, rtol=1e-5)

    # TODO(synk): VI_baseline.forward wraps torch.distributions objects (Normal/Bernoulli
    # log_prob, KL, reduce) around a full model's outputs; the distribution objects have no
    # Pallas equivalent, so this kernel produces the Normal parameters (mu, sigma) of q(w|y).
    print("KERNEL_OK")
</pallas_src>

<mosaic_0001>
module attributes {stable_mosaic.version = 11 : i64} {
  func.func @aux_w_kernel(%arg0: i32, %arg1: memref<8x1xf32, #tpu.memory_space<vmem>>, %arg2: memref<1x64xf32, #tpu.memory_space<vmem>>, %arg3: memref<1x64xf32, #tpu.memory_space<vmem>>, %arg4: memref<64x64xf32, #tpu.memory_space<vmem>>, %arg5: memref<1x64xf32, #tpu.memory_space<vmem>>, %arg6: memref<64x128xf32, #tpu.memory_space<vmem>>, %arg7: memref<1x128xf32, #tpu.memory_space<vmem>>, %arg8: memref<8x128xf32, #tpu.memory_space<vmem>>) attributes {dimension_semantics = [#tpu.dimension_semantics<parallel>], iteration_bounds = array<i64: 2>, scalar_prefetch = 0 : i64, scratch_operands = 0 : i64, tpu.core_type = #tpu.core_type<tc>, window_params = [{transform_indices = @transform_0, window_bounds = array<i64: 8, 1>}, {pipeline_mode = #tpu.pipeline_mode<synchronous>, transform_indices = @transform_1, window_bounds = array<i64: 1, 64>}, {pipeline_mode = #tpu.pipeline_mode<synchronous>, transform_indices = @transform_2, window_bounds = array<i64: 1, 64>}, {pipeline_mode = #tpu.pipeline_mode<synchronous>, transform_indices = @transform_3, window_bounds = array<i64: 64, 64>}, {pipeline_mode = #tpu.pipeline_mode<synchronous>, transform_indices = @transform_4, window_bounds = array<i64: 1, 64>}, {pipeline_mode = #tpu.pipeline_mode<synchronous>, transform_indices = @transform_5, window_bounds = array<i64: 64, 128>}, {pipeline_mode = #tpu.pipeline_mode<synchronous>, transform_indices = @transform_6, window_bounds = array<i64: 1, 128>}, {transform_indices = @transform_7, window_bounds = array<i64: 8, 128>}]} {
    %c0 = arith.constant 0 : index
    %c0_0 = arith.constant 0 : index
    %0 = vector.load %arg1[%c0, %c0_0] : memref<8x1xf32, #tpu.memory_space<vmem>>, vector<8x1xf32>
    %c0_1 = arith.constant 0 : index
    %c0_2 = arith.constant 0 : index
    %1 = vector.load %arg2[%c0_1, %c0_2] : memref<1x64xf32, #tpu.memory_space<vmem>>, vector<1x64xf32>
    %2 = vector.broadcast %0 : vector<8x1xf32> to vector<8x64xf32>
    %3 = vector.broadcast %1 : vector<1x64xf32> to vector<8x64xf32>
    %4 = arith.mulf %2, %3 : vector<8x64xf32>
    %c0_3 = arith.constant 0 : index
    %c0_4 = arith.constant 0 : index
    %5 = vector.load %arg3[%c0_3, %c0_4] : memref<1x64xf32, #tpu.memory_space<vmem>>, vector<1x64xf32>
    %6 = vector.broadcast %5 : vector<1x64xf32> to vector<8x64xf32>
    %7 = arith.addf %4, %6 : vector<8x64xf32>
    %cst = arith.constant 0.000000e+00 : f32
    %8 = vector.broadcast %cst : f32 to vector<8x64xf32>
    %9 = arith.maximumf %7, %8 : vector<8x64xf32>
    %c0_5 = arith.constant 0 : index
    %c0_6 = arith.constant 0 : index
    %10 = vector.load %arg4[%c0_5, %c0_6] : memref<64x64xf32, #tpu.memory_space<vmem>>, vector<64x64xf32>
    %cst_7 = arith.constant dense<0.000000e+00> : vector<8x64xf32>
    %11 = tpu.matmul %9, %10, %cst_7 {dimension_numbers = #tpu.dot_dimension_numbers<[1], [0], [0], [1], [0, 0, 1, 1], [], []>} : vector<8x64xf32>, vector<64x64xf32>, vector<8x64xf32> -> vector<8x64xf32>
    %c0_8 = arith.constant 0 : index
    %c0_9 = arith.constant 0 : index
    %12 = vector.load %arg5[%c0_8, %c0_9] : memref<1x64xf32, #tpu.memory_space<vmem>>, vector<1x64xf32>
    %13 = vector.broadcast %12 : vector<1x64xf32> to vector<8x64xf32>
    %14 = arith.addf %11, %13 : vector<8x64xf32>
    %cst_10 = arith.constant 0.000000e+00 : f32
    %15 = vector.broadcast %cst_10 : f32 to vector<8x64xf32>
    %16 = arith.maximumf %14, %15 : vector<8x64xf32>
    %c0_11 = arith.constant 0 : index
    %c0_12 = arith.constant 0 : index
    %17 = vector.load %arg6[%c0_11, %c0_12] : memref<64x128xf32, #tpu.memory_space<vmem>>, vector<64x128xf32>
    %cst_13 = arith.constant dense<0.000000e+00> : vector<8x128xf32>
    %18 = tpu.matmul %16, %17, %cst_13 {dimension_numbers = #tpu.dot_dimension_numbers<[1], [0], [0], [1], [0, 0, 1, 1], [], []>} : vector<8x64xf32>, vector<64x128xf32>, vector<8x128xf32> -> vector<8x128xf32>
    %c0_14 = arith.constant 0 : index
    %c0_15 = arith.constant 0 : index
    %19 = vector.load %arg7[%c0_14, %c0_15] : memref<1x128xf32, #tpu.memory_space<vmem>>, vector<1x128xf32>
    %20 = vector.broadcast %19 : vector<1x128xf32> to vector<8x128xf32>
    %21 = arith.addf %18, %20 : vector<8x128xf32>
    %22 = tpu.iota {dimensions = array<i32: 1>} : vector<8x128xi32>
    %c2_i32 = arith.constant 2 : i32
    %23 = vector.broadcast %c2_i32 : i32 to vector<8x128xi32>
    %24 = arith.cmpi slt, %22, %23 : vector<8x128xi32>
    %25 = math.exp %21 : vector<8x128xf32>
    %26 = arith.select %24, %21, %25 : vector<8x128xi1>, vector<8x128xf32>
    %c0_16 = arith.constant 0 : index
    %c0_17 = arith.constant 0 : index
    %27 = vector.load %arg8[%c0_16, %c0_17] : memref<8x128xf32, #tpu.memory_space<vmem>>, vector<8x128xf32>
    tpu.vector_store %arg8[%c0_16, %c0_17], %26 {strides = array<i32>} : memref<8x128xf32, #tpu.memory_space<vmem>>, vector<8x128xf32>,
    return
  }
  func.func @transform_0(%arg0: i32) -> (i32, i32) {
    %c0_i32 = arith.constant 0 : i32
    %c0_i32_0 = arith.constant 0 : i32
    return %arg0, %c0_i32 : i32, i32
  }
  func.func @transform_1(%arg0: i32) -> (i32, i32) {
    %c0_i32 = arith.constant 0 : i32
    %c0_i32_0 = arith.constant 0 : i32
    %c0_i32_1 = arith.constant 0 : i32
    return %c0_i32, %c0_i32_0 : i32, i32
  }
  func.func @transform_2(%arg0: i32) -> (i32, i32) {
    %c0_i32 = arith.constant 0 : i32
    %c0_i32_0 = arith.constant 0 : i32
    %c0_i32_1 = arith.constant 0 : i32
    return %c0_i32, %c0_i32_0 : i32, i32
  }
  func.func @transform_3(%arg0: i32) -> (i32, i32) {
    %c0_i32 = arith.constant 0 : i32
    %c0_i32_0 = arith.constant 0 : i32
    %c0_i32_1 = arith.constant 0 : i32
    return %c0_i32, %c0_i32_0 : i32, i32
  }
  func.func @transform_4(%arg0: i32) -> (i32, i32) {
    %c0_i32 = arith.constant 0 : i32
    %c0_i32_0 = arith.constant 0 : i32
    %c0_i32_1 = arith.constant 0 : i32
    return %c0_i32, %c0_i32_0 : i32, i32
  }
  func.func @transform_5(%arg0: i32) -> (i32, i32) {
    %c0_i32 = arith.constant 0 : i32
    %c0_i32_0 = arith.constant 0 : i32
    %c0_i32_1 = arith.constant 0 : i32
    return %c0_i32, %c0_i32_0 : i32, i32
  }
  func.func @transform_6(%arg0: i32) -> (i32, i32) {
    %c0_i32 = arith.constant 0 : i32
    %c0_i32_0 = arith.constant 0 : i32
    %c0_i32_1 = arith.constant 0 : i32
    return %c0_i32, %c0_i32_0 : i32, i32
  }
  func.func @transform_7(%arg0: i32) -> (i32, i32) {
    %c0_i32 = arith.constant 0 : i32
    %c0_i32_0 = arith.constant 0 : i32
    return %arg0, %c0_i32 : i32, i32
  }
}

</mosaic_0001>

<llo_original>
// kernel: aux_w_forward.1
$region0: #{aux_w_forward.1}
  #allocation0 [shape = 'u32[]', space=smem, size = 0x4, offset = 0x4, fixed_abs, tag = 'smem constant byte address 0x4 - core index']
  #allocation1 [shape = 'u32[144,128]{1,0:T(1,128)}', space=vmem, size = 0x12000, scoped, tag = 'internal scratch']
  %s0 = inlined_call_operand.vmem [shape: f32[16,1], index: 0, kind: input, shape index: {}]
  %s1 = inlined_call_operand.vmem [shape: f32[1,64], index: 1, kind: input, shape index: {}]
  %s2 = inlined_call_operand.vmem [shape: f32[1,64], index: 2, kind: input, shape index: {}]
  %s3 = inlined_call_operand.vmem [shape: f32[64,64], index: 3, kind: input, shape index: {}]
  %s4 = inlined_call_operand.vmem [shape: f32[1,64], index: 4, kind: input, shape index: {}]
  %s5 = inlined_call_operand.vmem [shape: f32[64,128], index: 5, kind: input, shape index: {}]
  %s6 = inlined_call_operand.vmem [shape: f32[1,128], index: 6, kind: input, shape index: {}]
  %s7 = inlined_call_operand.vmem [shape: f32[16,128], index: 7, kind: output, shape index: {}]
  %s8 = sld [smem:[#allocation0]]
  $region61: #{aux_w_forward.1} parent=0
    _
  %s10 = ssub.s32 1, %s8
  %s11 = scalar_select 0, %s10, %s8
  loop: start=0, step=1, limit=4
  $region2: #{aux_w_forward.1} parent=0 // loop_pre_header
    _
  $region3: #{aux_w_forward.1} parent=0 // loop_header
    %s13 = sphi 0, %s17
    %p14 = scmp.ge.s32.totalorder %s13, 4
    %s23 = sphi 0, %s25
    %s26 = sphi 0, %s23
    %s27 = sphi 0, %s26
    %s43 = sphi 0, %s27
    %s47 = sphi 0, %s47
    %s49 = sphi 0, %s47
    %s50 = sphi 0, %s49
    %s64 = sphi 0, %s50
    %s68 = sphi 0, %s68
    %s70 = sphi 0, %s68
    %s71 = sphi 0, %s70
    %s85 = sphi 0, %s71
    %s89 = sphi 0, %s89
    %s91 = sphi 0, %s89
    %s92 = sphi 0, %s91
    %s106 = sphi 0, %s92
    %s110 = sphi 0, %s110
    %s112 = sphi 0, %s110
    %s113 = sphi 0, %s112
    %s127 = sphi 0, %s113
    %s131 = sphi 0, %s131
    %s133 = sphi 0, %s131
    %s134 = sphi 0, %s133
    %s148 = sphi 0, %s134
    %s152 = sphi 0, %s152
    %s154 = sphi 0, %s152
    %s155 = sphi 0, %s154
    %s169 = sphi 0, %s155
    %s175 = sphi 0, %s177
    %s178 = sphi 0, %s175
    %s179 = sphi 0, %s178
    %s195 = sphi 0, %s179
  $region4: #{aux_w_forward.1} parent=0 // loop_header_branch
    %16 = sbr.rel (%p14) target = $region8
  $region5: #{aux_w_forward.1} parent=0 // loop_body
    %s18 = ssub.s32 %s13, 1
    %s19 = ssub.s32 %s13, 2
    %s20 = sadd.s32 %s13, 1
    %s21 = ssub.s32 %s13, %s20
    %p22 = scmp.eq.s32.totalorder %s21, 0
    %s24 = sadd.s32 %s23, 1
    %s25 = scalar_select %p22, %s23, %s24
    %p28 = pneg %p22
    %p29 = scmp.eq.s32.totalorder %s13, 1
    %p30 = por %p28, %p29
    %p31 = scmp.ne.s32.totalorder %s23, %s26
    %p32 = scmp.eq.s32.totalorder %s13, 0
    %p33 = por %p31, %p32
    %p34 = scmp.ne.s32.totalorder %s23, %s26
    %p35 = scmp.eq.s32.totalorder %s18, 1
    %p36 = por %p34, %p35
    %p37 = scmp.ne.s32.totalorder %s26, %s27
    %p38 = scmp.eq.s32.totalorder %s18, 0
    %p39 = por %p37, %p38
    %p40 = scmp.ne.s32.totalorder %s26, %s27
    %p41 = scmp.eq.s32.totalorder %s19, 1
    %p42 = por %p40, %p41
    %p44 = scmp.ne.s32.totalorder %s27, %s43
    %p45 = scmp.eq.s32.totalorder %s19, 0
    %p46 = por %p44, %p45
    %s48 = sadd.s32 %s47, 1
    %p51 = scmp.eq.s32.totalorder %s13, 1
    %p52 = scmp.ne.s32.totalorder %s47, %s49
    %p53 = scmp.eq.s32.totalorder %s13, 0
    %p54 = por %p52, %p53
    %p55 = scmp.ne.s32.totalorder %s47, %s49
    %p56 = scmp.eq.s32.totalorder %s18, 1
    %p57 = por %p55, %p56
    %p58 = scmp.ne.s32.totalorder %s49, %s50
    %p59 = scmp.eq.s32.totalorder %s18, 0
    %p60 = por %p58, %p59
    %p61 = scmp.ne.s32.totalorder %s49, %s50
    %p62 = scmp.eq.s32.totalorder %s19, 1
    %p63 = por %p61, %p62
    %p65 = scmp.ne.s32.totalorder %s50, %s64
    %p66 = scmp.eq.s32.totalorder %s19, 0
    %p67 = por %p65, %p66
    %s69 = sadd.s32 %s68, 1
    %p72 = scmp.eq.s32.totalorder %s13, 1
    %p73 = scmp.ne.s32.totalorder %s68, %s70
    %p74 = scmp.eq.s32.totalorder %s13, 0
    %p75 = por %p73, %p74
    %p76 = scmp.ne.s32.totalorder %s68, %s70
    %p77 = scmp.eq.s32.totalorder %s18, 1
    %p78 = por %p76, %p77
    %p79 = scmp.ne.s32.totalorder %s70, %s71
    %p80 = scmp.eq.s32.totalorder %s18, 0
    %p81 = por %p79, %p80
    %p82 = scmp.ne.s32.totalorder %s70, %s71
    %p83 = scmp.eq.s32.totalorder %s19, 1
    %p84 = por %p82, %p83
    %p86 = scmp.ne.s32.totalorder %s71, %s85
    %p87 = scmp.eq.s32.totalorder %s19, 0
    %p88 = por %p86, %p87
    %s90 = sadd.s32 %s89, 1
    %p93 = scmp.eq.s32.totalorder %s13, 1
    %p94 = scmp.ne.s32.totalorder %s89, %s91
    %p95 = scmp.eq.s32.totalorder %s13, 0
    %p96 = por %p94, %p95
    %p97 = scmp.ne.s32.totalorder %s89, %s91
    %p98 = scmp.eq.s32.totalorder %s18, 1
    %p99 = por %p97, %p98
    %p100 = scmp.ne.s32.totalorder %s91, %s92
    %p101 = scmp.eq.s32.totalorder %s18, 0
    %p102 = por %p100, %p101
    %p103 = scmp.ne.s32.totalorder %s91, %s92
    %p104 = scmp.eq.s32.totalorder %s19, 1
    %p105 = por %p103, %p104
    %p107 = scmp.ne.s32.totalorder %s92, %s106
    %p108 = scmp.eq.s32.totalorder %s19, 0
    %p109 = por %p107, %p108
    %s111 = sadd.s32 %s110, 1
    %p114 = scmp.eq.s32.totalorder %s13, 1
    %p115 = scmp.ne.s32.totalorder %s110, %s112
    %p116 = scmp.eq.s32.totalorder %s13, 0
    %p117 = por %p115, %p116
    %p118 = scmp.ne.s32.totalorder %s110, %s112
    %p119 = scmp.eq.s32.totalorder %s18, 1
    %p120 = por %p118, %p119
    %p121 = scmp.ne.s32.totalorder %s112, %s113
    %p122 = scmp.eq.s32.totalorder %s18, 0
    %p123 = por %p121, %p122
    %p124 = scmp.ne.s32.totalorder %s112, %s113
    %p125 = scmp.eq.s32.totalorder %s19, 1
    %p126 = por %p124, %p125
    %p128 = scmp.ne.s32.totalorder %s113, %s127
    %p129 = scmp.eq.s32.totalorder %s19, 0
    %p130 = por %p128, %p129
    %s132 = sadd.s32 %s131, 1
    %p135 = scmp.eq.s32.totalorder %s13, 1
    %p136 = scmp.ne.s32.totalorder %s131, %s133
    %p137 = scmp.eq.s32.totalorder %s13, 0
    %p138 = por %p136, %p137
    %p139 = scmp.ne.s32.totalorder %s131, %s133
    %p140 = scmp.eq.s32.totalorder %s18, 1
    %p141 = por %p139, %p140
    %p142 = scmp.ne.s32.totalorder %s133, %s134
    %p143 = scmp.eq.s32.totalorder %s18, 0
    %p144 = por %p142, %p143
    %p145 = scmp.ne.s32.totalorder %s133, %s134
    %p146 = scmp.eq.s32.totalorder %s19, 1
    %p147 = por %p145, %p146
    %p149 = scmp.ne.s32.totalorder %s134, %s148
    %p150 = scmp.eq.s32.totalorder %s19, 0
    %p151 = por %p149, %p150
    %s153 = sadd.s32 %s152, 1
    %p156 = scmp.eq.s32.totalorder %s13, 1
    %p157 = scmp.ne.s32.totalorder %s152, %s154
    %p158 = scmp.eq.s32.totalorder %s13, 0
    %p159 = por %p157, %p158
    %p160 = scmp.ne.s32.totalorder %s152, %s154
    %p161 = scmp.eq.s32.totalorder %s18, 1
    %p162 = por %p160, %p161
    %p163 = scmp.ne.s32.totalorder %s154, %s155
    %p164 = scmp.eq.s32.totalorder %s18, 0
    %p165 = por %p163, %p164
    %p166 = scmp.ne.s32.totalorder %s154, %s155
    %p167 = scmp.eq.s32.totalorder %s19, 1
    %p168 = por %p166, %p167
    %p170 = scmp.ne.s32.totalorder %s155, %s169
    %p171 = scmp.eq.s32.totalorder %s19, 0
    %p172 = por %p170, %p171
    %s173 = ssub.s32 %s13, %s20
    %p174 = scmp.eq.s32.totalorder %s173, 0
    %s176 = sadd.s32 %s175, 1
    %s177 = scalar_select %p174, %s175, %s176
    %p180 = pneg %p174
    %p181 = scmp.eq.s32.totalorder %s13, 1
    %p182 = por %p180, %p181
    %p183 = scmp.ne.s32.totalorder %s175, %s178
    %p184 = scmp.eq.s32.totalorder %s13, 0
    %p185 = por %p183, %p184
    %p186 = scmp.ne.s32.totalorder %s175, %s178
    %p187 = scmp.eq.s32.totalorder %s18, 1
    %p188 = por %p186, %p187
    %p189 = scmp.ne.s32.totalorder %s178, %s179
    %p190 = scmp.eq.s32.totalorder %s18, 0
    %p191 = por %p189, %p190
    %p192 = scmp.ne.s32.totalorder %s178, %s179
    %p193 = scmp.eq.s32.totalorder %s19, 1
    %p194 = por %p192, %p193
    %p196 = scmp.ne.s32.totalorder %s179, %s195
    %p197 = scmp.eq.s32.totalorder %s19, 0
    %p198 = por %p196, %p197
    %p199 = scmp.le.s32.totalorder 1, %s13
    %p200 = scmp.lt.s32.totalorder %s13, 3
    %p201 = pnand %p199, %p200
    %p202 = pneg %p201
    // Predicated region
    $region9: #{aux_w_forward.1} parent=5 // pred_check
      _
    $region10: #{aux_w_forward.1} parent=5 // pred_check_branch
      %204 = sbr.rel (%p201) target = $region12
    $region11: #{aux_w_forward.1} parent=5 // pred_region
      %s205 = ssub.s32 %s13, 1
      // Predicated region
      $region13: #{aux_w_forward.1} parent=11 // pred_check
        %p206 = pneg %p60
      $region14: #{aux_w_forward.1} parent=11 // pred_check_branch
        %208 = sbr.rel (%p206) target = $region16
      $region15: #{aux_w_forward.1} parent=11 // pred_region
        _
      $region16: #{aux_w_forward.1} parent=11 // pred_fallthru
        _
      // Predicated region
      $region17: #{aux_w_forward.1} parent=11 // pred_check
        %p209 = pneg %p81
      $region18: #{aux_w_forward.1} parent=11 // pred_check_branch
        %211 = sbr.rel (%p209) target = $region20
      $region19: #{aux_w_forward.1} parent=11 // pred_region
        _
      $region20: #{aux_w_forward.1} parent=11 // pred_fallthru
        _
      // Predicated region
      $region21: #{aux_w_forward.1} parent=11 // pred_check
        %p212 = pneg %p102
      $region22: #{aux_w_forward.1} parent=11 // pred_check_branch
        %214 = sbr.rel (%p212) target = $region24
      $region23: #{aux_w_forward.1} parent=11 // pred_region
        _
      $region24: #{aux_w_forward.1} parent=11 // pred_fallthru
        _
      // Predicated region
      $region25: #{aux_w_forward.1} parent=11 // pred_check
        %p215 = pneg %p123
      $region26: #{aux_w_forward.1} parent=11 // pred_check_branch
        %217 = sbr.rel (%p215) target = $region28
      $region27: #{aux_w_forward.1} parent=11 // pred_region
        _
      $region28: #{aux_w_forward.1} parent=11 // pred_fallthru
        _
      // Predicated region
      $region29: #{aux_w_forward.1} parent=11 // pred_check
        %p218 = pneg %p144
      $region30: #{aux_w_forward.1} parent=11 // pred_check_branch
        %220 = sbr.rel (%p218) target = $region32
      $region31: #{aux_w_forward.1} parent=11 // pred_region
        _
      $region32: #{aux_w_forward.1} parent=11 // pred_fallthru
        _
      // Predicated region
      $region33: #{aux_w_forward.1} parent=11 // pred_check
        %p221 = pneg %p165
      $region34: #{aux_w_forward.1} parent=11 // pred_check_branch
        %223 = sbr.rel (%p221) target = $region36
      $region35: #{aux_w_forward.1} parent=11 // pred_region
        _
      $region36: #{aux_w_forward.1} parent=11 // pred_fallthru
        _
    $region12: #{aux_w_forward.1} parent=5 // pred_fallthru
      _
    %p224 = scmp.lt.s32.totalorder %s13, 2
    // Predicated region
    $region37: #{aux_w_forward.1} parent=5 // pred_check
      %p225 = pneg %p224
    $region38: #{aux_w_forward.1} parent=5 // pred_check_branch
      %227 = sbr.rel (%p225) target = $region40
    $region39: #{aux_w_forward.1} parent=5 // pred_region
      // Predicated region
      $region41: #{aux_w_forward.1} parent=39 // pred_check
        %p228 = pneg %p33
      $region42: #{aux_w_forward.1} parent=39 // pred_check_branch
        %230 = sbr.rel (%p228) target = $region44
      $region43: #{aux_w_forward.1} parent=39 // pred_region
        %p231 = scmp.lt.s32.totalorder %s13, 1
        %s232 = scalar_select %p231, %s13, 1
        %s233 = smul.addr %s232, 8
        %s234 = scalar_lea.vmem %s0, %s233
      $region44: #{aux_w_forward.1} parent=39 // pred_fallthru
        _
    $region40: #{aux_w_forward.1} parent=5 // pred_fallthru
      _
    %p235 = scmp.le.s32.totalorder 1, %s13
    %p236 = scmp.lt.s32.totalorder %s13, 3
    %p237 = pnand %p235, %p236
    %p238 = pneg %p237
    // Predicated region
    $region45: #{aux_w_forward.1} parent=5 // pred_check
      _
    $region46: #{aux_w_forward.1} parent=5 // pred_check_branch
      %240 = sbr.rel (%p237) target = $region48
    $region47: #{aux_w_forward.1} parent=5 // pred_region
      %s241 = ssub.s32 %s13, 1
      %p242 = scmp.lt.s32.totalorder %s18, 1
      %s243 = scalar_select %p242, %s18, 1
      %s244 = smul.addr %s243, 8
      %s245 = scalar_lea.vmem %s0, %s244
      %p246 = pneg %p39
      %p247 = pneg %p36
      %p248 = pneg %p60
      %p249 = pneg %p57
      %p250 = pneg %p81
      %p251 = pneg %p78
      %p252 = pneg %p102
      %p253 = pneg %p99
      %p254 = pneg %p123
      %p255 = pneg %p120
      %p256 = pneg %p144
      %p257 = pneg %p141
      %p258 = pneg %p165
      %p259 = pneg %p162
      %p260 = pneg %p191
      %p261 = pneg %p188
      %p262 = scmp.lt.s32.totalorder %s18, 1
      %s263 = scalar_select %p262, %s18, 1
      %s264 = smul.addr %s263, 8
      %s265 = scalar_lea.vmem %s7, %s264
      %p266 = scmp.lt.s32.totalorder %s18, 1
      %s267 = scalar_select %p266, %s18, 1
      %s268 = smul.addr %s267, 8
      %s269 = scalar_lea.vmem %s0, %s268
      %p270 = scmp.lt.s32.totalorder %s18, 1
      %s271 = scalar_select %p270, %s18, 1
      %s272 = smul.addr %s271, 8
      %s273 = scalar_lea.vmem %s7, %s272
      %v274 = vld [vmem:[%s269] sm:$0xff]
      %v275 = vld [vmem:[%s1] sm:$0x1]
      %277 = vset.pattern.permute.xlu0 0
      %278 = vperm.xlu0 %277, %v274
      %v279 = vpop.permute.xlu0 %278
      %v282 = vlaneseq
      %v283 = vshrl.u32 %v282, 7
      %v284 = vsub.s32 0, %v283
      %v285 = vrot.slane %v275, %v284
      %v287 = vmul.f32 %v279, %v285
      %v288 = vld [vmem:[%s2] sm:$0x1]
      %v290 = vlaneseq
      %v291 = vshrl.u32 %v290, 7
      %v292 = vsub.s32 0, %v291
      %v293 = vrot.slane %v288, %v292
      %v295 = vadd.f32 %v287, %v293
      %v296 = vmax.f32 %v295, 0.0
      %v297 = vld [vmem:[%s3] sm:$0xff]
      %v298 = vld [vmem:[%s3 + $0x8] sm:$0xff]
      %v299 = vld [vmem:[%s3 + $0x10] sm:$0xff]
      %v300 = vld [vmem:[%s3 + $0x18] sm:$0xff]
      %v301 = vld [vmem:[%s3 + $0x20] sm:$0xff]
      %v302 = vld [vmem:[%s3 + $0x28] sm:$0xff]
      %v303 = vld [vmem:[%s3 + $0x30] sm:$0xff]
      %v304 = vld [vmem:[%s3 + $0x38] sm:$0xff]
      %v305 = vld [vmem:[%s4] sm:$0x1]
      %v307 = vlaneseq
      %v308 = vshrl.u32 %v307, 7
      %v309 = vsub.s32 0, %v308
      %v310 = vrot.slane %v305, %v309
      %vm312 = vcmask 523264
      %v314 = vsel %vm312, %v296, 0
      %316 = vmatprep.subr.mxu0 0.0
      %317 = vmatpush1.msra.mxu0 %v297
      %318 = vmatprep.subr.mxu0 0.0
      %319 = vmatpush1.msra.mxu0 %v298
      %320 = vmatprep.subr.mxu0 0.0
      %321 = vmatpush1.msra.mxu0 %v299
      %322 = vmatprep.subr.mxu0 0.0
      %323 = vmatpush1.msra.mxu0 %v300
      %324 = vmatprep.subr.mxu0 0.0
      %325 = vmatpush1.msra.mxu0 %v301
      %326 = vmatprep.subr.mxu0 0.0
      %327 = vmatpush1.msra.mxu0 %v302
      %328 = vmatprep.subr.mxu0 0.0
      %329 = vmatpush1.msra.mxu0 %v303
      %330 = vmatprep.subr.mxu0 0.0
      %331 = vmatpush1.msra.mxu0 %v304
      %332 = vmatprep.subr.mxu0 0.0
      %333 = vmatpush1.msra.mxu0 0.0
      %334 = vmatprep.subr.mxu0 0.0
      %335 = vmatpush1.msra.mxu0 0.0
      %336 = vmatprep.subr.mxu0 0.0
      %337 = vmatpush1.msra.mxu0 0.0
      %338 = vmatprep.subr.mxu0 0.0
      %339 = vmatpush1.msra.mxu0 0.0
      %340 = vmatprep.subr.mxu0 0.0
      %341 = vmatpush1.msra.mxu0 0.0
      %342 = vmatprep.subr.mxu0 0.0
      %343 = vmatpush1.msra.mxu0 0.0
      %344 = vmatprep.subr.mxu0 0.0
      %345 = vmatpush1.msra.mxu0 0.0
      %346 = vmatprep.subr.mxu0 0.0
      %347 = vmatpush1.msra.mxu0 0.0
      %348 = vmatprep.subr.mxu0 0.0
      %349 = vmatpush1.msra.mxu0 0.0
      %350 = vmatprep.subr.mxu0 0.0
      %351 = vmatpush1.msra.mxu0 0.0
      %352 = vmatprep.subr.mxu0 0.0
      %353 = vmatpush1.msra.mxu0 0.0
      %354 = vmatprep.subr.mxu0 0.0
      %355 = vmatpush1.msra.mxu0 0.0
      %356 = vmatprep.subr.mxu0 0.0
      %357 = vmatpush1.msra.mxu0 0.0
      %358 = vmatprep.subr.mxu0 0.0
      %359 = vmatpush1.msra.mxu0 0.0
      %360 = vmatprep.subr.mxu0 0.0
      %361 = vmatpush1.msra.mxu0 0.0
      %362 = vmatprep.subr.mxu0 0.0
      %363 = vmatpush1.msra.mxu0 0.0
      %364 = vmatprep.subr.mxu0 0.0
      %365 = vmatpush1.msra.mxu0 0.0
      %366 = vmatprep.subr.mxu0 0.0
      %367 = vmatpush1.msra.mxu0 0.0
      %368 = vmatprep.subr.mxu0 0.0
      %369 = vmatpush1.msra.mxu0 0.0
      %370 = vmatprep.subr.mxu0 0.0
      %371 = vmatpush1.msra.mxu0 0.0
      %372 = vmatprep.subr.mxu0 0.0
      %373 = vmatpush1.msra.mxu0 0.0
      %374 = vmatprep.subr.mxu0 0.0
      %375 = vmatpush1.msra.mxu0 0.0
      %376 = vmatprep.subr.mxu0 0.0
      %377 = vmatpush1.msra.mxu0 0.0
      %378 = vmatprep.subr.mxu0 0.0
      %379 = vmatpush1.msra.mxu0 0.0
      %380 = vmatprep.mubr.f32.mxu0 0.0
      %381 = vmatmul.mubr.f32.gmra.mrb[0].mxu0 %v314
      %v382 = vpop.f32.mrb[0].mxu0
      %v383 = vadd.f32 %v310, %v382
      %v384 = vpop.f32.mrb[0].mxu0
      %385 = vdwg.mxu0
      %v386 = vmax.f32 %v383, 0.0
      %v387 = vld [vmem:[%s5] sm:$0xff]
      %v388 = vld [vmem:[%s5 + $0x8] sm:$0xff]
      %v389 = vld [vmem:[%s5 + $0x10] sm:$0xff]
      %v390 = vld [vmem:[%s5 + $0x18] sm:$0xff]
      %v391 = vld [vmem:[%s5 + $0x20] sm:$0xff]
      %v392 = vld [vmem:[%s5 + $0x28] sm:$0xff]
      %v393 = vld [vmem:[%s5 + $0x30] sm:$0xff]
      %v394 = vld [vmem:[%s5 + $0x38] sm:$0xff]
      %v395 = vld [vmem:[%s6] sm:$0x1]
      %v397 = vlaneseq
      %v398 = vshrl.u32 %v397, 7
      %v399 = vsub.s32 0, %v398
      %v400 = vrot.slane %v395, %v399
      %v403 = vsel %vm312, %v386, 0
      %405 = vmatprep.subr.mxu0 0.0
      %406 = vmatpush1.msra.mxu0 %v387
      %407 = vmatprep.subr.mxu0 0.0
      %408 = vmatpush1.msra.mxu0 %v388
      %409 = vmatprep.subr.mxu0 0.0
      %410 = vmatpush1.msra.mxu0 %v389
      %411 = vmatprep.subr.mxu0 0.0
      %412 = vmatpush1.msra.mxu0 %v390
      %413 = vmatprep.subr.mxu0 0.0
      %414 = vmatpush1.msra.mxu0 %v391
      %415 = vmatprep.subr.mxu0 0.0
      %416 = vmatpush1.msra.mxu0 %v392
      %417 = vmatprep.subr.mxu0 0.0
      %418 = vmatpush1.msra.mxu0 %v393
      %419 = vmatprep.subr.mxu0 0.0
      %420 = vmatpush1.msra.mxu0 %v394
      %421 = vmatprep.subr.mxu0 0.0
      %422 = vmatpush1.msra.mxu0 0.0
      %423 = vmatprep.subr.mxu0 0.0
      %424 = vmatpush1.msra.mxu0 0.0
      %425 = vmatprep.subr.mxu0 0.0
      %426 = vmatpush1.msra.mxu0 0.0
      %427 = vmatprep.subr.mxu0 0.0
      %428 = vmatpush1.msra.mxu0 0.0
      %429 = vmatprep.subr.mxu0 0.0
      %430 = vmatpush1.msra.mxu0 0.0
      %431 = vmatprep.subr.mxu0 0.0
      %432 = vmatpush1.msra.mxu0 0.0
      %433 = vmatprep.subr.mxu0 0.0
      %434 = vmatpush1.msra.mxu0 0.0
      %435 = vmatprep.subr.mxu0 0.0
      %436 = vmatpush1.msra.mxu0 0.0
      %437 = vmatprep.subr.mxu0 0.0
      %438 = vmatpush1.msra.mxu0 0.0
      %439 = vmatprep.subr.mxu0 0.0
      %440 = vmatpush1.msra.mxu0 0.0
      %441 = vmatprep.subr.mxu0 0.0
      %442 = vmatpush1.msra.mxu0 0.0
      %443 = vmatprep.subr.mxu0 0.0
      %444 = vmatpush1.msra.mxu0 0.0
      %445 = vmatprep.subr.mxu0 0.0
      %446 = vmatpush1.msra.mxu0 0.0
      %447 = vmatprep.subr.mxu0 0.0
      %448 = vmatpush1.msra.mxu0 0.0
      %449 = vmatprep.subr.mxu0 0.0
      %450 = vmatpush1.msra.mxu0 0.0
      %451 = vmatprep.subr.mxu0 0.0
      %452 = vmatpush1.msra.mxu0 0.0
      %453 = vmatprep.subr.mxu0 0.0
      %454 = vmatpush1.msra.mxu0 0.0
      %455 = vmatprep.subr.mxu0 0.0
      %456 = vmatpush1.msra.mxu0 0.0
      %457 = vmatprep.subr.mxu0 0.0
      %458 = vmatpush1.msra.mxu0 0.0
      %459 = vmatprep.subr.mxu0 0.0
      %460 = vmatpush1.msra.mxu0 0.0
      %461 = vmatprep.subr.mxu0 0.0
      %462 = vmatpush1.msra.mxu0 0.0
      %463 = vmatprep.subr.mxu0 0.0
      %464 = vmatpush1.msra.mxu0 0.0
      %465 = vmatprep.subr.mxu0 0.0
      %466 = vmatpush1.msra.mxu0 0.0
      %467 = vmatprep.subr.mxu0 0.0
      %468 = vmatpush1.msra.mxu0 0.0
      %469 = vmatprep.mubr.f32.mxu0 0.0
      %470 = vmatmul.mubr.f32.gmra.mrb[0].mxu0 %v403
      %v471 = vpop.f32.mrb[0].mxu0
      %v472 = vadd.f32 %v400, %v471
      %v473 = vpop.f32.mrb[0].mxu0
      %474 = vdwg.mxu0
      %v475 = vlaneseq
      %v476 = vand.u32 %v475, 127
      %vm477 = vcmp.lt.s32.totalorder %v476, 2
      %v478 = vmul.f32 %v472, 1.442695
      %v479 = vpow.pop %v478
      %v480 = vsel %vm477, %v472, %v479
      %481 = vst [vmem:[%s273] sm:$0xff] %v480
      %p482 = scmp.lt.s32.totalorder %s18, 1
      %s483 = scalar_select %p482, %s18, 1
      %s484 = smul.addr %s483, 8
      %s485 = scalar_lea.vmem %s7, %s484
      // Predicated region
      $region49: #{aux_w_forward.1} parent=47 // pred_check
        %p486 = pneg %p188
      $region50: #{aux_w_forward.1} parent=47 // pred_check_branch
        %488 = sbr.rel (%p486) target = $region52
      $region51: #{aux_w_forward.1} parent=47 // pred_region
        _
      $region52: #{aux_w_forward.1} parent=47 // pred_fallthru
        _
    $region48: #{aux_w_forward.1} parent=5 // pred_fallthru
      _
    %p489 = scmp.le.s32.totalorder 2, %s13
    // Predicated region
    $region53: #{aux_w_forward.1} parent=5 // pred_check
      %p490 = pneg %p489
    $region54: #{aux_w_forward.1} parent=5 // pred_check_branch
      %492 = sbr.rel (%p490) target = $region56
    $region55: #{aux_w_forward.1} parent=5 // pred_region
      %s493 = ssub.s32 %s13, 2
      // Predicated region
      $region57: #{aux_w_forward.1} parent=55 // pred_check
        %p494 = pneg %p194
      $region58: #{aux_w_forward.1} parent=55 // pred_check_branch
        %496 = sbr.rel (%p494) target = $region60
      $region59: #{aux_w_forward.1} parent=55 // pred_region
        %p497 = scmp.lt.s32.totalorder %s19, 1
        %s498 = scalar_select %p497, %s19, 1
        %s499 = smul.addr %s498, 8
        %s500 = scalar_lea.vmem %s7, %s499
      $region60: #{aux_w_forward.1} parent=55 // pred_fallthru
        _
    $region56: #{aux_w_forward.1} parent=5 // pred_fallthru
      _
  $region6: #{aux_w_forward.1} parent=0 // loop_footer
    %s17 = sadd.s32 1, %s13
  $region7: #{aux_w_forward.1} parent=0 // loop_footer_branch
    %12 = sbr.rel target = $region3
  $region8: #{aux_w_forward.1} parent=0 // loop_exit
    _

</llo_original>
